<compile_context>
chip_gen: v6e
topology: v6e:2x2x1
jax: 0.10.0
libtpu: 0.0.40
codegen_flags: <defaults>
</compile_context>

<pallas_src>
import jax
import jax.numpy as jnp
from jax import lax
from jax.experimental import pallas as pl
from jax.experimental.pallas import tpu as pltpu

_TARGET_BLOCK_BYTES = 1 * 1024 * 1024          # ~1 MiB per input block
_LANE_CHOICES = (2048, 1024, 512, 256, 128)
_MIN_LANES = 128


def _round_up(x, m):
    return ((x + m - 1) // m) * m


def _choose_layout(n_elems, block_elems):
    """Pick (lanes, rows, block_rows) for the flattened element stream."""
    lanes = _MIN_LANES
    for lw in _LANE_CHOICES:
        if n_elems % lw == 0:
            lanes = lw
            break
    rows = pl.cdiv(n_elems, lanes)
    block_rows = _round_up(max(block_elems // lanes, 8), 8)
    block_rows = min(block_rows, _round_up(rows, 8))
    return lanes, rows, block_rows


def _as_2d(arr, rows, lanes):
    """Flatten to (rows, lanes). Pads (a copy) only when n % lanes != 0."""
    flat = arr.reshape(-1)
    want = rows * lanes
    if want != flat.shape[0]:
        flat = jnp.pad(flat, (0, want - flat.shape[0]))
    return flat.reshape(rows, lanes)


def _detect_core_count():
    """Best-effort TensorCore count per chip (None if unknown)."""
    try:
        info = pltpu.get_tpu_info()
        for name in ("num_cores", "core_count", "num_tensorcores",
                     "num_cores_per_chip", "tensor_cores_per_chip"):
            v = getattr(info, name, None)
            if isinstance(v, int) and v >= 1:
                return v
    except Exception:
        pass
    try:
        v = getattr(jax.devices()[0], "num_cores", None)
        if isinstance(v, int) and v >= 1:
            return v
    except Exception:
        pass
    return None


def _num_parallel_slices(nb):
    if nb < 2:
        return 1
    detected = _detect_core_count()
    if detected is not None:
        return max(1, min(detected, nb, 8))
    # Unknown hardware: a 2-way split only costs a tiny extra (8, lanes)
    # accumulator block on single-core chips and enables megacore sharding
    # on dual-TensorCore chips (v7x).
    return 2


def _focal_terms(x, t, gamma):
    """Per-element focal loss WITHOUT alpha, computed in f32."""
    # Numerically stable BCE-with-logits (same formula PyTorch uses).
    bce = jnp.maximum(x, 0.0) - x * t + jnp.log1p(jnp.exp(-jnp.abs(x)))   # EUP x2
    pt = jnp.exp(-bce)                                                    # EUP
    omp = 1.0 - pt
    g = float(gamma)
    if g == 0.0:
        return bce
    if g == float(int(g)) and 1.0 <= g <= 4.0:      # static multiply path
        f = omp
        for _ in range(int(g) - 1):
            f = f * omp
        return f * bce
    # Fractional gamma: clamp base >= 0 (bce can be ~-ulp for fractional t).
    return (jnp.maximum(omp, 0.0) ** g) * bce


def _make_elementwise_kernel(alpha, gamma):
    def kernel(x_ref, t_ref, o_ref):
        x = x_ref[...].astype(jnp.float32)
        t = t_ref[...].astype(jnp.float32)
        o_ref[...] = (alpha * _focal_terms(x, t, gamma)).astype(o_ref.dtype)
    return kernel


def _make_sum_kernel(gamma, k_steps, block_rows, lanes, n_elems, needs_mask):
    block_elems = block_rows * lanes

    def kernel(x_ref, t_ref, acc_ref):
        p = pl.program_id(0)
        k = pl.program_id(1)

        @pl.when(k == 0)
        def _():
            acc_ref[...] = jnp.zeros_like(acc_ref)

        x = x_ref[...].astype(jnp.float32)
        t = t_ref[...].astype(jnp.float32)
        term = _focal_terms(x, t, gamma)

        if needs_mask:
            # Mask padded lanes, padded rows of the last partial block and
            # whole out-of-range (clamped) blocks via the logical flat index.
            base = (p * k_steps + k) * block_elems
            r = lax.broadcasted_iota(jnp.int32, (block_rows, lanes), 0)
            c = lax.broadcasted_iota(jnp.int32, (block_rows, lanes), 1)
            idx = base + r * lanes + c
            term = jnp.where(idx < n_elems, term, 0.0)

        # Partial sublane reduce into a tiny resident accumulator (VPU adds).
        acc_ref[...] += term.reshape(block_rows // 8, 8, lanes).sum(axis=0)

    return kernel


def focal_loss(inputs, targets, *, alpha=0.99, gamma=2.0, reduction='mean',
               block_elems=None):
    """JAX/Pallas equivalent of FocalLoss.forward (any input shape)."""
    assert inputs.shape == targets.shape
    orig_shape = inputs.shape
    n_elems = int(inputs.size)
    alpha = float(alpha)
    gamma = float(gamma)

    if n_elems == 0:
        if reduction == 'none':
            return jnp.zeros(orig_shape, dtype=inputs.dtype)
        if reduction == 'sum':
            return jnp.array(0.0, jnp.float32)
        return jnp.array(jnp.nan, jnp.float32)          # torch.mean of empty

    if block_elems is None:
        itemsize = jnp.dtype(inputs.dtype).itemsize
        block_elems = max(_TARGET_BLOCK_BYTES // itemsize, 8 * _MIN_LANES)

    lanes, rows, block_rows = _choose_layout(n_elems, block_elems)
    nb = pl.cdiv(rows, block_rows)
    x2 = _as_2d(inputs, rows, lanes)
    t2 = _as_2d(targets, rows, lanes)

    if reduction == 'none':
        out_dtype = (inputs.dtype if jnp.issubdtype(inputs.dtype, jnp.floating)
                     else jnp.float32)
        out = pl.pallas_call(
            _make_elementwise_kernel(alpha, gamma),
            out_shape=jax.ShapeDtypeStruct((rows, lanes), out_dtype),
            grid_spec=pltpu.PrefetchScalarGridSpec(
                num_scalar_prefetch=0,
                grid=(nb,),
                in_specs=[pl.BlockSpec((block_rows, lanes), lambda i: (i, 0)),
                          pl.BlockSpec((block_rows, lanes), lambda i: (i, 0))],
                out_specs=pl.BlockSpec((block_rows, lanes), lambda i: (i, 0)),
            ),
            compiler_params=pltpu.CompilerParams(
                dimension_semantics=("parallel",)),
        )(x2, t2)
        out_flat = out.reshape(-1)
        if rows * lanes != n_elems:
            out_flat = out_flat[:n_elems]
        return out_flat.reshape(orig_shape)

    if reduction not in ('mean', 'sum'):
        raise ValueError(f"unknown reduction: {reduction!r}")

    n_cores = _num_parallel_slices(nb)
    k_steps = pl.cdiv(nb, n_cores)
    needs_mask = (n_cores * k_steps * block_rows * lanes) > n_elems
    last_block = nb - 1

    def in_index_map(p, k):
        # Clamp: overflow steps (p*k_steps + k >= nb) re-read the last real
        # block; their contribution is zeroed by the in-kernel index mask.
        return (jnp.minimum(p * k_steps + k, last_block), 0)

    partials = pl.pallas_call(
        _make_sum_kernel(gamma, k_steps, block_rows, lanes, n_elems, needs_mask),
        out_shape=jax.ShapeDtypeStruct((n_cores * 8, lanes), jnp.float32),
        grid_spec=pltpu.PrefetchScalarGridSpec(
            num_scalar_prefetch=0,
            grid=(n_cores, k_steps),
            in_specs=[pl.BlockSpec((block_rows, lanes), in_index_map),
                      pl.BlockSpec((block_rows, lanes), in_index_map)],
            # Constant in k -> the small accumulator block stays resident.
            out_specs=pl.BlockSpec((8, lanes), lambda p, k: (p, 0)),
        ),
        compiler_params=pltpu.CompilerParams(
            dimension_semantics=("parallel", "arbitrary")),
    )(x2, t2)

    total = alpha * jnp.sum(partials, dtype=jnp.float32)
    if reduction == 'sum':
        return total
    return total / n_elems


def _reference_focal_loss(inputs, targets, *, alpha=0.99, gamma=2.0,
                          reduction='mean'):
    """Pure-JAX reference mirroring the PyTorch module."""
    x = inputs.astype(jnp.float32)
    t = targets.astype(jnp.float32)
    bce = jnp.maximum(x, 0.0) - x * t + jnp.log1p(jnp.exp(-jnp.abs(x)))
    pt = jnp.exp(-bce)
    fl = alpha * (1.0 - pt) ** gamma * bce
    if reduction == 'mean':
        return jnp.mean(fl)
    if reduction == 'sum':
        return jnp.sum(fl)
    return fl


if __name__ == "__main__":
    key = jax.random.PRNGKey(0)
    k1, k2, k3, k4, k5, k6 = jax.random.split(key, 6)

    # 1) main case: (N, C) logits + binary targets, reduction='mean'
    N, C = 256, 32
    inputs = jax.random.normal(k1, (N, C), dtype=jnp.float32)
    targets = jax.random.bernoulli(k2, 0.3, (N, C)).astype(jnp.float32)
    loss = jax.block_until_ready(focal_loss(inputs, targets))
    ref = _reference_focal_loss(inputs, targets)
    assert jnp.allclose(loss, ref, atol=1e-6, rtol=1e-5), (loss, ref)

    # 2) ragged shape (exercises lane padding + in-kernel tail mask), 'sum'
    inputs2 = jax.random.normal(k3, (100, 7), dtype=jnp.float32)
    targets2 = jax.random.bernoulli(k4, 0.5, (100, 7)).astype(jnp.float32)
    loss2 = jax.block_until_ready(focal_loss(inputs2, targets2, reduction='sum'))
    ref2 = _reference_focal_loss(inputs2, targets2, reduction='sum')
    assert jnp.allclose(loss2, ref2, atol=1e-3, rtol=1e-5), (loss2, ref2)

    # 3) reduction='none' on the ragged shape (dtype-preserving output)
    loss3 = jax.block_until_ready(focal_loss(inputs2, targets2, reduction='none'))
    ref3 = _reference_focal_loss(inputs2, targets2, reduction='none')
    assert loss3.shape == inputs2.shape and loss3.dtype == inputs2.dtype
    assert jnp.allclose(loss3, ref3, atol=1e-6, rtol=1e-5), "none mismatch"

    # 4) multi-block accumulation + core split + mask (small block override)
    inputs4 = jax.random.normal(k5, (192, 40), dtype=jnp.float32)
    targets4 = jax.random.bernoulli(k6, 0.4, (192, 40)).astype(jnp.float32)
    loss4 = jax.block_until_ready(focal_loss(inputs4, targets4, block_elems=1024))
    ref4 = _reference_focal_loss(inputs4, targets4)
    assert jnp.allclose(loss4, ref4, atol=1e-6, rtol=1e-5), (loss4, ref4)

    # 5) fractional gamma (pow path with clamp)
    loss5 = jax.block_until_ready(focal_loss(inputs4, targets4, gamma=1.5))
    ref5 = _reference_focal_loss(inputs4, targets4, gamma=1.5)
    assert jnp.allclose(loss5, ref5, atol=1e-6, rtol=1e-5), (loss5, ref5)

    # 6) bf16 inputs, reduction='none' writes bf16
    in_bf = inputs[:64, :].astype(jnp.bfloat16)
    tg_bf = targets[:64, :].astype(jnp.bfloat16)
    loss6 = jax.block_until_ready(focal_loss(in_bf, tg_bf, reduction='none'))
    ref6 = _reference_focal_loss(in_bf, tg_bf, reduction='none')
    assert loss6.dtype == jnp.bfloat16
    assert jnp.allclose(loss6.astype(jnp.float32), ref6, atol=2e-2, rtol=5e-2)

    print("KERNEL_OK")
</pallas_src>

<mosaic_0001>
module attributes {stable_mosaic.version = 11 : i64} {
  func.func @kernel(%arg0: i32, %arg1: i32, %arg2: memref<8x2048xf32, #tpu.memory_space<vmem>>, %arg3: memref<8x2048xf32, #tpu.memory_space<vmem>>, %arg4: memref<8x2048xf32, #tpu.memory_space<vmem>>) attributes {dimension_semantics = [#tpu.dimension_semantics<parallel>, #tpu.dimension_semantics<arbitrary>], iteration_bounds = array<i64: 1, 1>, scalar_prefetch = 0 : i64, scratch_operands = 0 : i64, tpu.core_type = #tpu.core_type<tc>, window_params = [{transform_indices = @transform_0, window_bounds = array<i64: 8, 2048>}, {transform_indices = @transform_1, window_bounds = array<i64: 8, 2048>}, {transform_indices = @transform_2, window_bounds = array<i64: 8, 2048>}]} {
    %c0_i32 = arith.constant 0 : i32
    %0 = arith.cmpi eq, %arg1, %c0_i32 : i32
    %1 = arith.extui %0 : i1 to i32
    %c0_i32_0 = arith.constant 0 : i32
    %2 = arith.cmpi ne, %1, %c0_i32_0 : i32
    scf.if %2 {
      %cst_13 = arith.constant 0.000000e+00 : f32
      %41 = vector.broadcast %cst_13 : f32 to vector<8x2048xf32>
      %c0_14 = arith.constant 0 : index
      %c0_15 = arith.constant 0 : index
      %42 = vector.load %arg4[%c0_14, %c0_15] : memref<8x2048xf32, #tpu.memory_space<vmem>>, vector<8x2048xf32>
      tpu.vector_store %arg4[%c0_14, %c0_15], %41 {strides = array<i32>} : memref<8x2048xf32, #tpu.memory_space<vmem>>, vector<8x2048xf32>,
    } else {
    }
    %c0 = arith.constant 0 : index
    %c0_1 = arith.constant 0 : index
    %3 = vector.load %arg2[%c0, %c0_1] : memref<8x2048xf32, #tpu.memory_space<vmem>>, vector<8x2048xf32>
    %c0_2 = arith.constant 0 : index
    %c0_3 = arith.constant 0 : index
    %4 = vector.load %arg3[%c0_2, %c0_3] : memref<8x2048xf32, #tpu.memory_space<vmem>>, vector<8x2048xf32>
    %cst = arith.constant 0.000000e+00 : f32
    %5 = vector.broadcast %cst : f32 to vector<8x2048xf32>
    %6 = arith.maximumf %3, %5 : vector<8x2048xf32>
    %7 = arith.mulf %3, %4 : vector<8x2048xf32>
    %8 = arith.subf %6, %7 : vector<8x2048xf32>
    %9 = math.absf %3 : vector<8x2048xf32>
    %cst_4 = arith.constant 0.000000e+00 : f32
    %10 = vector.broadcast %cst_4 : f32 to vector<8x2048xf32>
    %11 = arith.subf %10, %9 : vector<8x2048xf32>
    %12 = math.exp %11 : vector<8x2048xf32>
    %13 = math.log1p %12 : vector<8x2048xf32>
    %14 = arith.addf %8, %13 : vector<8x2048xf32>
    %cst_5 = arith.constant 0.000000e+00 : f32
    %15 = vector.broadcast %cst_5 : f32 to vector<8x2048xf32>
    %16 = arith.subf %15, %14 : vector<8x2048xf32>
    %17 = math.exp %16 : vector<8x2048xf32>
    %cst_6 = arith.constant 1.000000e+00 : f32
    %18 = vector.broadcast %cst_6 : f32 to vector<8x2048xf32>
    %19 = arith.subf %18, %17 : vector<8x2048xf32>
    %20 = arith.mulf %19, %19 : vector<8x2048xf32>
    %21 = arith.mulf %20, %14 : vector<8x2048xf32>
    %c1_i32 = arith.constant 1 : i32
    %22 = arith.muli %arg0, %c1_i32 : i32
    %23 = arith.addi %22, %arg1 : i32
    %c16384_i32 = arith.constant 16384 : i32
    %24 = arith.muli %23, %c16384_i32 : i32
    %25 = tpu.iota {dimensions = array<i32: 0>} : vector<8x2048xi32>
    %26 = tpu.iota {dimensions = array<i32: 1>} : vector<8x2048xi32>
    %c2048_i32 = arith.constant 2048 : i32
    %27 = vector.broadcast %c2048_i32 : i32 to vector<8x2048xi32>
    %28 = arith.muli %25, %27 : vector<8x2048xi32>
    %29 = vector.broadcast %24 : i32 to vector<8x2048xi32>
    %30 = arith.addi %29, %28 : vector<8x2048xi32>
    %31 = arith.addi %30, %26 : vector<8x2048xi32>
    %c8192_i32 = arith.constant 8192 : i32
    %32 = vector.broadcast %c8192_i32 : i32 to vector<8x2048xi32>
    %33 = arith.cmpi slt, %31, %32 : vector<8x2048xi32>
    %cst_7 = arith.constant 0.000000e+00 : f32
    %34 = vector.broadcast %cst_7 : f32 to vector<8x2048xf32>
    %35 = arith.select %33, %21, %34 : vector<8x2048xi1>, vector<8x2048xf32>
    %c0_8 = arith.constant 0 : index
    %c0_9 = arith.constant 0 : index
    %36 = vector.load %arg4[%c0_8, %c0_9] : memref<8x2048xf32, #tpu.memory_space<vmem>>, vector<8x2048xf32>
    %37 = vector.shape_cast %35 : vector<8x2048xf32> to vector<1x8x2048xf32>
    %cst_10 = arith.constant dense<0.000000e+00> : vector<8x2048xf32>
    %38 = vector.multi_reduction <add>, %37, %cst_10 [0] : vector<1x8x2048xf32> to vector<8x2048xf32>
    %39 = arith.addf %36, %38 : vector<8x2048xf32>
    %c0_11 = arith.constant 0 : index
    %c0_12 = arith.constant 0 : index
    %40 = vector.load %arg4[%c0_11, %c0_12] : memref<8x2048xf32, #tpu.memory_space<vmem>>, vector<8x2048xf32>
    tpu.vector_store %arg4[%c0_11, %c0_12], %39 {strides = array<i32>} : memref<8x2048xf32, #tpu.memory_space<vmem>>, vector<8x2048xf32>,
    return
  }
  func.func @transform_0(%arg0: i32, %arg1: i32) -> (i32, i32) {
    %c1_i32 = arith.constant 1 : i32
    %0 = arith.muli %arg0, %c1_i32 : i32
    %1 = arith.addi %0, %arg1 : i32
    %c0_i32 = arith.constant 0 : i32
    %2 = arith.minsi %1, %c0_i32 : i32
    %c0_i32_0 = arith.constant 0 : i32
    %c0_i32_1 = arith.constant 0 : i32
    return %2, %c0_i32_0 : i32, i32
  }
  func.func @transform_1(%arg0: i32, %arg1: i32) -> (i32, i32) {
    %c1_i32 = arith.constant 1 : i32
    %0 = arith.muli %arg0, %c1_i32 : i32
    %1 = arith.addi %0, %arg1 : i32
    %c0_i32 = arith.constant 0 : i32
    %2 = arith.minsi %1, %c0_i32 : i32
    %c0_i32_0 = arith.constant 0 : i32
    %c0_i32_1 = arith.constant 0 : i32
    return %2, %c0_i32_0 : i32, i32
  }
  func.func @transform_2(%arg0: i32, %arg1: i32) -> (i32, i32) {
    %c0_i32 = arith.constant 0 : i32
    %c0_i32_0 = arith.constant 0 : i32
    return %arg0, %c0_i32 : i32, i32
  }
}

</mosaic_0001>

<llo_original>
// kernel: tpu_custom_call.1
$region0: #{tpu_custom_call.1}
  #allocation0 [shape = 'u32[]', space=smem, size = 0x4, offset = 0x4, fixed_abs, tag = 'smem constant byte address 0x4 - core index']
  #allocation1 [shape = 'u32[144,128]{1,0:T(1,128)}', space=vmem, size = 0x12000, scoped, tag = 'internal scratch']
  %s0 = inlined_call_operand.hbm [shape: f32[4,2048], index: 0, kind: input, shape index: {}]
  %s1 = inlined_call_operand.hbm [shape: f32[4,2048], index: 1, kind: input, shape index: {}]
  %s2 = inlined_call_operand.hbm [shape: f32[8,2048], index: 2, kind: output, shape index: {}]
  %s3 = sld [smem:[#allocation0]]
  $region30: #{tpu_custom_call.1} parent=0
    _
  %s5 = ssub.s32 1, %s3
  %s6 = scalar_select 0, %s5, %s3
  $region1: #{tpu_custom_call.1} parent=0
    #allocation2 [shape = 'u8[65536]{0}', space=vmem, size = 0x10000, scoped, tag = 'input window, operand 0, single buffered']
    #allocation3 [shape = 's32[1]{0}', space=sflag, size = 0x4, scoped, tag = 'scoped memory for tpu_custom_call.1']
    #allocation4 [shape = 's32[1]{0}', space=sflag, size = 0x4, scoped, tag = 'scoped memory for tpu_custom_call.1']
    #allocation5 [shape = 'u8[65536]{0}', space=vmem, size = 0x10000, scoped, tag = 'input window, operand 1, single buffered']
    #allocation6 [shape = 's32[1]{0}', space=sflag, size = 0x4, scoped, tag = 'scoped memory for tpu_custom_call.1']
    #allocation7 [shape = 'u8[65536]{0}', space=vmem, size = 0x10000, scoped, tag = 'output window, operand 0, single buffered']
    %7 = vsyncpa [#allocation3], 0
    %8 = vsyncpa [#allocation6], 0
    %9 = vsyncpa [#allocation4], 0
    // Predicated region
    $region2: #{tpu_custom_call.1} parent=1 // pred_check
      _
    $region3: #{tpu_custom_call.1} parent=1 // pred_check_branch
      %11 = sbr.rel (0) target = $region5
    $region4: #{tpu_custom_call.1} parent=1 // pred_region
      %s12 = sadd.s32 0, 0
      %p13 = scmp.lt.s32.totalorder %s12, 0
      %s14 = scalar_select %p13, %s12, 0
      %s15 = smul.u32 2, %s14
      %s16 = ssub.s32 1, %s15
      %s17 = smul.u32 64, %s16
      %s18 = smul.u32 %s17, 16
      %s20 = ssub.s32 2048, %s18
      %21 = vsyncadd [#allocation3], %s20
      %p22 = scmp.ne.s32.totalorder 0, %s18
      %s23 = smul.addr %s15, 16
      %s24 = smul.addr %s23, 64
      %s25 = scalar_lea.hbm %s0, %s24
      %s26 = smul.u32 64, %s16
      %s27 = sshll.u32 [#allocation2], 4
      %s28 = int_to_ptr.vmem [resolvable:$true] %s27
      %s29 = sshll.u32 %s26, 4
      %33 = dma.hbm_to_vmem [thread:$0]  (%p22), %s25, %s29, %s28, [#allocation3], 1024, 1024, 64
    $region5: #{tpu_custom_call.1} parent=1 // pred_fallthru
      _
    // Predicated region
    $region6: #{tpu_custom_call.1} parent=1 // pred_check
      _
    $region7: #{tpu_custom_call.1} parent=1 // pred_check_branch
      %35 = sbr.rel (0) target = $region9
    $region8: #{tpu_custom_call.1} parent=1 // pred_region
      %s36 = sadd.s32 0, 0
      %p37 = scmp.lt.s32.totalorder %s36, 0
      %s38 = scalar_select %p37, %s36, 0
      %s39 = smul.u32 2, %s38
      %s40 = ssub.s32 1, %s39
      %s41 = smul.u32 64, %s40
      %s42 = smul.u32 %s41, 16
      %s44 = ssub.s32 2048, %s42
      %45 = vsyncadd [#allocation6], %s44
      %p46 = scmp.ne.s32.totalorder 0, %s42
      %s47 = smul.addr %s39, 16
      %s48 = smul.addr %s47, 64
      %s49 = scalar_lea.hbm %s1, %s48
      %s50 = smul.u32 64, %s40
      %s51 = sshll.u32 [#allocation5], 4
      %s52 = int_to_ptr.vmem [resolvable:$true] %s51
      %s53 = sshll.u32 %s50, 4
      %57 = dma.hbm_to_vmem [thread:$0]  (%p46), %s49, %s53, %s52, [#allocation6], 1024, 1024, 64
    $region9: #{tpu_custom_call.1} parent=1 // pred_fallthru
      _
    // Predicated region
    $region10: #{tpu_custom_call.1} parent=1 // pred_check
      _
    $region11: #{tpu_custom_call.1} parent=1 // pred_check_branch
      %59 = sbr.rel (0) target = $region13
    $region12: #{tpu_custom_call.1} parent=1 // pred_region
      %60 = dma.done [#allocation3], 2048
    $region13: #{tpu_custom_call.1} parent=1 // pred_fallthru
      _
    // Predicated region
    $region14: #{tpu_custom_call.1} parent=1 // pred_check
      _
    $region15: #{tpu_custom_call.1} parent=1 // pred_check_branch
      %62 = sbr.rel (0) target = $region17
    $region16: #{tpu_custom_call.1} parent=1 // pred_region
      %63 = dma.done [#allocation6], 2048
    $region17: #{tpu_custom_call.1} parent=1 // pred_fallthru
      _
    %s64 = sadd.s32 0, 0
    %p65 = scmp.lt.s32.totalorder %s64, 0
    %s66 = scalar_select %p65, %s64, 0
    %s67 = smul.u32 2, %s66
    %s68 = ssub.s32 1, %s67
    %s69 = smul.u32 64, %s68
    %s70 = smul.u32 %s69, 16
    %s71 = sadd.s32 0, 0
    %p72 = scmp.lt.s32.totalorder %s71, 0
    %s73 = scalar_select %p72, %s71, 0
    %s74 = smul.u32 2, %s73
    %s75 = ssub.s32 1, %s74
    %s76 = smul.u32 64, %s75
    %s77 = smul.u32 %s76, 16
    %p78 = scmp.eq.s32.totalorder 0, 0
    // Predicated region
    $region18: #{tpu_custom_call.1} parent=1 // pred_check
      %p79 = pneg %p78
    $region19: #{tpu_custom_call.1} parent=1 // pred_check_branch
      %81 = sbr.rel (%p79) target = $region21
    $region20: #{tpu_custom_call.1} parent=1 // pred_region
      %82 = vst [vmem:[#allocation7] sm:$0xff] 0.0
      %83 = vst [vmem:[#allocation7 + $0x8] sm:$0xff] 0.0
      %84 = vst [vmem:[#allocation7 + $0x10] sm:$0xff] 0.0
      %85 = vst [vmem:[#allocation7 + $0x18] sm:$0xff] 0.0
      %86 = vst [vmem:[#allocation7 + $0x20] sm:$0xff] 0.0
      %87 = vst [vmem:[#allocation7 + $0x28] sm:$0xff] 0.0
      %88 = vst [vmem:[#allocation7 + $0x30] sm:$0xff] 0.0
      %89 = vst [vmem:[#allocation7 + $0x38] sm:$0xff] 0.0
      %90 = vst [vmem:[#allocation7 + $0x40] sm:$0xff] 0.0
      %91 = vst [vmem:[#allocation7 + $0x48] sm:$0xff] 0.0
      %92 = vst [vmem:[#allocation7 + $0x50] sm:$0xff] 0.0
      %93 = vst [vmem:[#allocation7 + $0x58] sm:$0xff] 0.0
      %94 = vst [vmem:[#allocation7 + $0x60] sm:$0xff] 0.0
      %95 = vst [vmem:[#allocation7 + $0x68] sm:$0xff] 0.0
      %96 = vst [vmem:[#allocation7 + $0x70] sm:$0xff] 0.0
      %97 = vst [vmem:[#allocation7 + $0x78] sm:$0xff] 0.0
    $region21: #{tpu_custom_call.1} parent=1 // pred_fallthru
      _
    %v98 = vld [vmem:[#allocation2] sm:$0xff]
    %v99 = vld [vmem:[#allocation2 + $0x8] sm:$0xff]
    %v100 = vld [vmem:[#allocation2 + $0x10] sm:$0xff]
    %v101 = vld [vmem:[#allocation2 + $0x18] sm:$0xff]
    %v102 = vld [vmem:[#allocation2 + $0x20] sm:$0xff]
    %v103 = vld [vmem:[#allocation2 + $0x28] sm:$0xff]
    %v104 = vld [vmem:[#allocation2 + $0x30] sm:$0xff]
    %v105 = vld [vmem:[#allocation2 + $0x38] sm:$0xff]
    %v106 = vld [vmem:[#allocation2 + $0x40] sm:$0xff]
    %v107 = vld [vmem:[#allocation2 + $0x48] sm:$0xff]
    %v108 = vld [vmem:[#allocation2 + $0x50] sm:$0xff]
    %v109 = vld [vmem:[#allocation2 + $0x58] sm:$0xff]
    %v110 = vld [vmem:[#allocation2 + $0x60] sm:$0xff]
    %v111 = vld [vmem:[#allocation2 + $0x68] sm:$0xff]
    %v112 = vld [vmem:[#allocation2 + $0x70] sm:$0xff]
    %v113 = vld [vmem:[#allocation2 + $0x78] sm:$0xff]
    %v114 = vld [vmem:[#allocation5] sm:$0xff]
    %v115 = vld [vmem:[#allocation5 + $0x8] sm:$0xff]
    %v116 = vld [vmem:[#allocation5 + $0x10] sm:$0xff]
    %v117 = vld [vmem:[#allocation5 + $0x18] sm:$0xff]
    %v118 = vld [vmem:[#allocation5 + $0x20] sm:$0xff]
    %v119 = vld [vmem:[#allocation5 + $0x28] sm:$0xff]
    %v120 = vld [vmem:[#allocation5 + $0x30] sm:$0xff]
    %v121 = vld [vmem:[#allocation5 + $0x38] sm:$0xff]
    %v122 = vld [vmem:[#allocation5 + $0x40] sm:$0xff]
    %v123 = vld [vmem:[#allocation5 + $0x48] sm:$0xff]
    %v124 = vld [vmem:[#allocation5 + $0x50] sm:$0xff]
    %v125 = vld [vmem:[#allocation5 + $0x58] sm:$0xff]
    %v126 = vld [vmem:[#allocation5 + $0x60] sm:$0xff]
    %v127 = vld [vmem:[#allocation5 + $0x68] sm:$0xff]
    %v128 = vld [vmem:[#allocation5 + $0x70] sm:$0xff]
    %v129 = vld [vmem:[#allocation5 + $0x78] sm:$0xff]
    %v130 = vmax.f32 %v98, 0.0
    %v131 = vmax.f32 %v99, 0.0
    %v132 = vmax.f32 %v100, 0.0
    %v133 = vmax.f32 %v101, 0.0
    %v134 = vmax.f32 %v102, 0.0
    %v135 = vmax.f32 %v103, 0.0
    %v136 = vmax.f32 %v104, 0.0
    %v137 = vmax.f32 %v105, 0.0
    %v138 = vmax.f32 %v106, 0.0
    %v139 = vmax.f32 %v107, 0.0
    %v140 = vmax.f32 %v108, 0.0
    %v141 = vmax.f32 %v109, 0.0
    %v142 = vmax.f32 %v110, 0.0
    %v143 = vmax.f32 %v111, 0.0
    %v144 = vmax.f32 %v112, 0.0
    %v145 = vmax.f32 %v113, 0.0
    %v146 = vmul.f32 %v98, %v114
    %v147 = vmul.f32 %v99, %v115
    %v148 = vmul.f32 %v100, %v116
    %v149 = vmul.f32 %v101, %v117
    %v150 = vmul.f32 %v102, %v118
    %v151 = vmul.f32 %v103, %v119
    %v152 = vmul.f32 %v104, %v120
    %v153 = vmul.f32 %v105, %v121
    %v154 = vmul.f32 %v106, %v122
    %v155 = vmul.f32 %v107, %v123
    %v156 = vmul.f32 %v108, %v124
    %v157 = vmul.f32 %v109, %v125
    %v158 = vmul.f32 %v110, %v126
    %v159 = vmul.f32 %v111, %v127
    %v160 = vmul.f32 %v112, %v128
    %v161 = vmul.f32 %v113, %v129
    %v162 = vsub.f32 %v130, %v146
    %v163 = vsub.f32 %v131, %v147
    %v164 = vsub.f32 %v132, %v148
    %v165 = vsub.f32 %v133, %v149
    %v166 = vsub.f32 %v134, %v150
    %v167 = vsub.f32 %v135, %v151
    %v168 = vsub.f32 %v136, %v152
    %v169 = vsub.f32 %v137, %v153
    %v170 = vsub.f32 %v138, %v154
    %v171 = vsub.f32 %v139, %v155
    %v172 = vsub.f32 %v140, %v156
    %v173 = vsub.f32 %v141, %v157
    %v174 = vsub.f32 %v142, %v158
    %v175 = vsub.f32 %v143, %v159
    %v176 = vsub.f32 %v144, %v160
    %v177 = vsub.f32 %v145, %v161
    %v178 = vand.u32 2147483647, %v98
    %v179 = vand.u32 2147483647, %v99
    %v180 = vand.u32 2147483647, %v100
    %v181 = vand.u32 2147483647, %v101
    %v182 = vand.u32 2147483647, %v102
    %v183 = vand.u32 2147483647, %v103
    %v184 = vand.u32 2147483647, %v104
    %v185 = vand.u32 2147483647, %v105
    %v186 = vand.u32 2147483647, %v106
    %v187 = vand.u32 2147483647, %v107
    %v188 = vand.u32 2147483647, %v108
    %v189 = vand.u32 2147483647, %v109
    %v190 = vand.u32 2147483647, %v110
    %v191 = vand.u32 2147483647, %v111
    %v192 = vand.u32 2147483647, %v112
    %v193 = vand.u32 2147483647, %v113
    %v194 = vsub.f32 0.0, %v178
    %v195 = vsub.f32 0.0, %v179
    %v196 = vsub.f32 0.0, %v180
    %v197 = vsub.f32 0.0, %v181
    %v198 = vsub.f32 0.0, %v182
    %v199 = vsub.f32 0.0, %v183
    %v200 = vsub.f32 0.0, %v184
    %v201 = vsub.f32 0.0, %v185
    %v202 = vsub.f32 0.0, %v186
    %v203 = vsub.f32 0.0, %v187
    %v204 = vsub.f32 0.0, %v188
    %v205 = vsub.f32 0.0, %v189
    %v206 = vsub.f32 0.0, %v190
    %v207 = vsub.f32 0.0, %v191
    %v208 = vsub.f32 0.0, %v192
    %v209 = vsub.f32 0.0, %v193
    %v210 = vmul.f32 %v194, 1.442695
    %v211 = vpow.pop %v210
    %v212 = vmul.f32 %v195, 1.442695
    %v213 = vpow.pop %v212
    %v214 = vmul.f32 %v196, 1.442695
    %v215 = vpow.pop %v214
    %v216 = vmul.f32 %v197, 1.442695
    %v217 = vpow.pop %v216
    %v218 = vmul.f32 %v198, 1.442695
    %v219 = vpow.pop %v218
    %v220 = vmul.f32 %v199, 1.442695
    %v221 = vpow.pop %v220
    %v222 = vmul.f32 %v200, 1.442695
    %v223 = vpow.pop %v222
    %v224 = vmul.f32 %v201, 1.442695
    %v225 = vpow.pop %v224
    %v226 = vmul.f32 %v202, 1.442695
    %v227 = vpow.pop %v226
    %v228 = vmul.f32 %v203, 1.442695
    %v229 = vpow.pop %v228
    %v230 = vmul.f32 %v204, 1.442695
    %v231 = vpow.pop %v230
    %v232 = vmul.f32 %v205, 1.442695
    %v233 = vpow.pop %v232
    %v234 = vmul.f32 %v206, 1.442695
    %v235 = vpow.pop %v234
    %v236 = vmul.f32 %v207, 1.442695
    %v237 = vpow.pop %v236
    %v238 = vmul.f32 %v208, 1.442695
    %v239 = vpow.pop %v238
    %v240 = vmul.f32 %v209, 1.442695
    %v241 = vpow.pop %v240
    %v242 = vadd.f32 %v211, 1.0
    %v243 = vlog2.pop %v242
    %v244 = vmul.f32 %v243, 0.6931472
    %v245 = vmul.f32 -0.5, %v211
    %v246 = vadd.f32 %v245, 1.0
    %v247 = vmul.f32 %v246, %v211
    %v248 = vand.u32 2147483647, %v211
    %vm249 = vcmp.lt.f32.partialorder %v248, 0.0004427343
    %v250 = vsel %vm249, %v247, %v244
    %v251 = vadd.f32 %v213, 1.0
    %v252 = vlog2.pop %v251
    %v253 = vmul.f32 %v252, 0.6931472
    %v254 = vmul.f32 -0.5, %v213
    %v255 = vadd.f32 %v254, 1.0
    %v256 = vmul.f32 %v255, %v213
    %v257 = vand.u32 2147483647, %v213
    %vm258 = vcmp.lt.f32.partialorder %v257, 0.0004427343
    %v259 = vsel %vm258, %v256, %v253
    %v260 = vadd.f32 %v215, 1.0
    %v261 = vlog2.pop %v260
    %v262 = vmul.f32 %v261, 0.6931472
    %v263 = vmul.f32 -0.5, %v215
    %v264 = vadd.f32 %v263, 1.0
    %v265 = vmul.f32 %v264, %v215
    %v266 = vand.u32 2147483647, %v215
    %vm267 = vcmp.lt.f32.partialorder %v266, 0.0004427343
    %v268 = vsel %vm267, %v265, %v262
    %v269 = vadd.f32 %v217, 1.0
    %v270 = vlog2.pop %v269
    %v271 = vmul.f32 %v270, 0.6931472
    %v272 = vmul.f32 -0.5, %v217
    %v273 = vadd.f32 %v272, 1.0
    %v274 = vmul.f32 %v273, %v217
    %v275 = vand.u32 2147483647, %v217
    %vm276 = vcmp.lt.f32.partialorder %v275, 0.0004427343
    %v277 = vsel %vm276, %v274, %v271
    %v278 = vadd.f32 %v219, 1.0
    %v279 = vlog2.pop %v278
    %v280 = vmul.f32 %v279, 0.6931472
    %v281 = vmul.f32 -0.5, %v219
    %v282 = vadd.f32 %v281, 1.0
    %v283 = vmul.f32 %v282, %v219
    %v284 = vand.u32 2147483647, %v219
    %vm285 = vcmp.lt.f32.partialorder %v284, 0.0004427343
    %v286 = vsel %vm285, %v283, %v280
    %v287 = vadd.f32 %v221, 1.0
    %v288 = vlog2.pop %v287
    %v289 = vmul.f32 %v288, 0.6931472
    %v290 = vmul.f32 -0.5, %v221
    %v291 = vadd.f32 %v290, 1.0
    %v292 = vmul.f32 %v291, %v221
    %v293 = vand.u32 2147483647, %v221
    %vm294 = vcmp.lt.f32.partialorder %v293, 0.0004427343
    %v295 = vsel %vm294, %v292, %v289
    %v296 = vadd.f32 %v223, 1.0
    %v297 = vlog2.pop %v296
    %v298 = vmul.f32 %v297, 0.6931472
    %v299 = vmul.f32 -0.5, %v223
    %v300 = vadd.f32 %v299, 1.0
    %v301 = vmul.f32 %v300, %v223
    %v302 = vand.u32 2147483647, %v223
    %vm303 = vcmp.lt.f32.partialorder %v302, 0.0004427343
    %v304 = vsel %vm303, %v301, %v298
    %v305 = vadd.f32 %v225, 1.0
    %v306 = vlog2.pop %v305
    %v307 = vmul.f32 %v306, 0.6931472
    %v308 = vmul.f32 -0.5, %v225
    %v309 = vadd.f32 %v308, 1.0
    %v310 = vmul.f32 %v309, %v225
    %v311 = vand.u32 2147483647, %v225
    %vm312 = vcmp.lt.f32.partialorder %v311, 0.0004427343
    %v313 = vsel %vm312, %v310, %v307
    %v314 = vadd.f32 %v227, 1.0
    %v315 = vlog2.pop %v314
    %v316 = vmul.f32 %v315, 0.6931472
    %v317 = vmul.f32 -0.5, %v227
    %v318 = vadd.f32 %v317, 1.0
    %v319 = vmul.f32 %v318, %v227
    %v320 = vand.u32 2147483647, %v227
    %vm321 = vcmp.lt.f32.partialorder %v320, 0.0004427343
    %v322 = vsel %vm321, %v319, %v316
    %v323 = vadd.f32 %v229, 1.0
    %v324 = vlog2.pop %v323
    %v325 = vmul.f32 %v324, 0.6931472
    %v326 = vmul.f32 -0.5, %v229
    %v327 = vadd.f32 %v326, 1.0
    %v328 = vmul.f32 %v327, %v229
    %v329 = vand.u32 2147483647, %v229
    %vm330 = vcmp.lt.f32.partialorder %v329, 0.0004427343
    %v331 = vsel %vm330, %v328, %v325
    %v332 = vadd.f32 %v231, 1.0
    %v333 = vlog2.pop %v332
    %v334 = vmul.f32 %v333, 0.6931472
    %v335 = vmul.f32 -0.5, %v231
    %v336 = vadd.f32 %v335, 1.0
    %v337 = vmul.f32 %v336, %v231
    %v338 = vand.u32 2147483647, %v231
    %vm339 = vcmp.lt.f32.partialorder %v338, 0.0004427343
    %v340 = vsel %vm339, %v337, %v334
    %v341 = vadd.f32 %v233, 1.0
    %v342 = vlog2.pop %v341
    %v343 = vmul.f32 %v342, 0.6931472
    %v344 = vmul.f32 -0.5, %v233
    %v345 = vadd.f32 %v344, 1.0
    %v346 = vmul.f32 %v345, %v233
    %v347 = vand.u32 2147483647, %v233
    %vm348 = vcmp.lt.f32.partialorder %v347, 0.0004427343
    %v349 = vsel %vm348, %v346, %v343
    %v350 = vadd.f32 %v235, 1.0
    %v351 = vlog2.pop %v350
    %v352 = vmul.f32 %v351, 0.6931472
    %v353 = vmul.f32 -0.5, %v235
    %v354 = vadd.f32 %v353, 1.0
    %v355 = vmul.f32 %v354, %v235
    %v356 = vand.u32 2147483647, %v235
    %vm357 = vcmp.lt.f32.partialorder %v356, 0.0004427343
    %v358 = vsel %vm357, %v355, %v352
    %v359 = vadd.f32 %v237, 1.0
    %v360 = vlog2.pop %v359
    %v361 = vmul.f32 %v360, 0.6931472
    %v362 = vmul.f32 -0.5, %v237
    %v363 = vadd.f32 %v362, 1.0
    %v364 = vmul.f32 %v363, %v237
    %v365 = vand.u32 2147483647, %v237
    %vm366 = vcmp.lt.f32.partialorder %v365, 0.0004427343
    %v367 = vsel %vm366, %v364, %v361
    %v368 = vadd.f32 %v239, 1.0
    %v369 = vlog2.pop %v368
    %v370 = vmul.f32 %v369, 0.6931472
    %v371 = vmul.f32 -0.5, %v239
    %v372 = vadd.f32 %v371, 1.0
    %v373 = vmul.f32 %v372, %v239
    %v374 = vand.u32 2147483647, %v239
    %vm375 = vcmp.lt.f32.partialorder %v374, 0.0004427343
    %v376 = vsel %vm375, %v373, %v370
    %v377 = vadd.f32 %v241, 1.0
    %v378 = vlog2.pop %v377
    %v379 = vmul.f32 %v378, 0.6931472
    %v380 = vmul.f32 -0.5, %v241
    %v381 = vadd.f32 %v380, 1.0
    %v382 = vmul.f32 %v381, %v241
    %v383 = vand.u32 2147483647, %v241
    %vm384 = vcmp.lt.f32.partialorder %v383, 0.0004427343
    %v385 = vsel %vm384, %v382, %v379
    %v386 = vadd.f32 %v162, %v250
    %v387 = vadd.f32 %v163, %v259
    %v388 = vadd.f32 %v164, %v268
    %v389 = vadd.f32 %v165, %v277
    %v390 = vadd.f32 %v166, %v286
    %v391 = vadd.f32 %v167, %v295
    %v392 = vadd.f32 %v168, %v304
    %v393 = vadd.f32 %v169, %v313
    %v394 = vadd.f32 %v170, %v322
    %v395 = vadd.f32 %v171, %v331
    %v396 = vadd.f32 %v172, %v340
    %v397 = vadd.f32 %v173, %v349
    %v398 = vadd.f32 %v174, %v358
    %v399 = vadd.f32 %v175, %v367
    %v400 = vadd.f32 %v176, %v376
    %v401 = vadd.f32 %v177, %v385
    %v402 = vsub.f32 0.0, %v386
    %v403 = vsub.f32 0.0, %v387
    %v404 = vsub.f32 0.0, %v388
    %v405 = vsub.f32 0.0, %v389
    %v406 = vsub.f32 0.0, %v390
    %v407 = vsub.f32 0.0, %v391
    %v408 = vsub.f32 0.0, %v392
    %v409 = vsub.f32 0.0, %v393
    %v410 = vsub.f32 0.0, %v394
    %v411 = vsub.f32 0.0, %v395
    %v412 = vsub.f32 0.0, %v396
    %v413 = vsub.f32 0.0, %v397
    %v414 = vsub.f32 0.0, %v398
    %v415 = vsub.f32 0.0, %v399
    %v416 = vsub.f32 0.0, %v400
    %v417 = vsub.f32 0.0, %v401
    %v418 = vmul.f32 %v402, 1.442695
    %v419 = vpow.pop %v418
    %v420 = vmul.f32 %v403, 1.442695
    %v421 = vpow.pop %v420
    %v422 = vmul.f32 %v404, 1.442695
    %v423 = vpow.pop %v422
    %v424 = vmul.f32 %v405, 1.442695
    %v425 = vpow.pop %v424
    %v426 = vmul.f32 %v406, 1.442695
    %v427 = vpow.pop %v426
    %v428 = vmul.f32 %v407, 1.442695
    %v429 = vpow.pop %v428
    %v430 = vmul.f32 %v408, 1.442695
    %v431 = vpow.pop %v430
    %v432 = vmul.f32 %v409, 1.442695
    %v433 = vpow.pop %v432
    %v434 = vmul.f32 %v410, 1.442695
    %v435 = vpow.pop %v434
    %v436 = vmul.f32 %v411, 1.442695
    %v437 = vpow.pop %v436
    %v438 = vmul.f32 %v412, 1.442695
    %v439 = vpow.pop %v438
    %v440 = vmul.f32 %v413, 1.442695
    %v441 = vpow.pop %v440
    %v442 = vmul.f32 %v414, 1.442695
    %v443 = vpow.pop %v442
    %v444 = vmul.f32 %v415, 1.442695
    %v445 = vpow.pop %v444
    %v446 = vmul.f32 %v416, 1.442695
    %v447 = vpow.pop %v446
    %v448 = vmul.f32 %v417, 1.442695
    %v449 = vpow.pop %v448
    %v450 = vsub.f32 1.0, %v419
    %v451 = vsub.f32 1.0, %v421
    %v452 = vsub.f32 1.0, %v423
    %v453 = vsub.f32 1.0, %v425
    %v454 = vsub.f32 1.0, %v427
    %v455 = vsub.f32 1.0, %v429
    %v456 = vsub.f32 1.0, %v431
    %v457 = vsub.f32 1.0, %v433
    %v458 = vsub.f32 1.0, %v435
    %v459 = vsub.f32 1.0, %v437
    %v460 = vsub.f32 1.0, %v439
    %v461 = vsub.f32 1.0, %v441
    %v462 = vsub.f32 1.0, %v443
    %v463 = vsub.f32 1.0, %v445
    %v464 = vsub.f32 1.0, %v447
    %v465 = vsub.f32 1.0, %v449
    %v466 = vmul.f32 %v450, %v450
    %v467 = vmul.f32 %v451, %v451
    %v468 = vmul.f32 %v452, %v452
    %v469 = vmul.f32 %v453, %v453
    %v470 = vmul.f32 %v454, %v454
    %v471 = vmul.f32 %v455, %v455
    %v472 = vmul.f32 %v456, %v456
    %v473 = vmul.f32 %v457, %v457
    %v474 = vmul.f32 %v458, %v458
    %v475 = vmul.f32 %v459, %v459
    %v476 = vmul.f32 %v460, %v460
    %v477 = vmul.f32 %v461, %v461
    %v478 = vmul.f32 %v462, %v462
    %v479 = vmul.f32 %v463, %v463
    %v480 = vmul.f32 %v464, %v464
    %v481 = vmul.f32 %v465, %v465
    %v482 = vmul.f32 %v466, %v386
    %v483 = vmul.f32 %v467, %v387
    %v484 = vmul.f32 %v468, %v388
    %v485 = vmul.f32 %v469, %v389
    %v486 = vmul.f32 %v470, %v390
    %v487 = vmul.f32 %v471, %v391
    %v488 = vmul.f32 %v472, %v392
    %v489 = vmul.f32 %v473, %v393
    %v490 = vmul.f32 %v474, %v394
    %v491 = vmul.f32 %v475, %v395
    %v492 = vmul.f32 %v476, %v396
    %v493 = vmul.f32 %v477, %v397
    %v494 = vmul.f32 %v478, %v398
    %v495 = vmul.f32 %v479, %v399
    %v496 = vmul.f32 %v480, %v400
    %v497 = vmul.f32 %v481, %v401
    %s498 = sadd.s32 0, 0
    %s499 = smul.u32 %s498, 16384
    %v500 = vlaneseq
    %v501 = vshrl.u32 %v500, 7
    %v502 = vlaneseq
    %v503 = vand.u32 %v502, 127
    %v504 = vadd.s32 %v503, 128
    %v505 = vadd.s32 %v503, 256
    %v506 = vadd.s32 %v503, 384
    %v507 = vadd.s32 %v503, 512
    %v508 = vadd.s32 %v503, 640
    %v509 = vadd.s32 %v503, 768
    %v510 = vadd.s32 %v503, 896
    %v511 = vadd.s32 %v503, 1024
    %v512 = vadd.s32 %v503, 1152
    %v513 = vadd.s32 %v503, 1280
    %v514 = vadd.s32 %v503, 1408
    %v515 = vadd.s32 %v503, 1536
    %v516 = vadd.s32 %v503, 1664
    %v517 = vadd.s32 %v503, 1792
    %v518 = vadd.s32 %v503, 1920
    %v519 = vmul.u32 %v501, 2048
    %v520 = vstv %s499
    %v521 = vadd.s32 %v520, %v519
    %v522 = vadd.s32 %v521, %v503
    %v523 = vadd.s32 %v521, %v504
    %v524 = vadd.s32 %v521, %v505
    %v525 = vadd.s32 %v521, %v506
    %v526 = vadd.s32 %v521, %v507
    %v527 = vadd.s32 %v521, %v508
    %v528 = vadd.s32 %v521, %v509
    %v529 = vadd.s32 %v521, %v510
    %v530 = vadd.s32 %v521, %v511
    %v531 = vadd.s32 %v521, %v512
    %v532 = vadd.s32 %v521, %v513
    %v533 = vadd.s32 %v521, %v514
    %v534 = vadd.s32 %v521, %v515
    %v535 = vadd.s32 %v521, %v516
    %v536 = vadd.s32 %v521, %v517
    %v537 = vadd.s32 %v521, %v518
    %vm538 = vcmp.lt.s32.totalorder %v522, 8192
    %vm539 = vcmp.lt.s32.totalorder %v523, 8192
    %vm540 = vcmp.lt.s32.totalorder %v524, 8192
    %vm541 = vcmp.lt.s32.totalorder %v525, 8192
    %vm542 = vcmp.lt.s32.totalorder %v526, 8192
    %vm543 = vcmp.lt.s32.totalorder %v527, 8192
    %vm544 = vcmp.lt.s32.totalorder %v528, 8192
    %vm545 = vcmp.lt.s32.totalorder %v529, 8192
    %vm546 = vcmp.lt.s32.totalorder %v530, 8192
    %vm547 = vcmp.lt.s32.totalorder %v531, 8192
    %vm548 = vcmp.lt.s32.totalorder %v532, 8192
    %vm549 = vcmp.lt.s32.totalorder %v533, 8192
    %vm550 = vcmp.lt.s32.totalorder %v534, 8192
    %vm551 = vcmp.lt.s32.totalorder %v535, 8192
    %vm552 = vcmp.lt.s32.totalorder %v536, 8192
    %vm553 = vcmp.lt.s32.totalorder %v537, 8192
    %v570 = vcombine.low %v482, %v490
    %v571 = vcombine.high %v482, %v490
    %v572 = vcombine.low %v483, %v491
    %v573 = vcombine.high %v483, %v491
    %v574 = vcombine.low %v484, %v492
    %v575 = vcombine.high %v484, %v492
    %v576 = vcombine.low %v485, %v493
    %v577 = vcombine.high %v485, %v493
    %v578 = vcombine.low %v486, %v494
    %v579 = vcombine.high %v486, %v494
    %v580 = vcombine.low %v487, %v495
    %v581 = vcombine.high %v487, %v495
    %v582 = vcombine.low %v488, %v496
    %v583 = vcombine.high %v488, %v496
    %v584 = vcombine.low %v489, %v497
    %v585 = vcombine.high %v489, %v497
    %v602 = vsel %vm538, %v570, 0.0
    %v603 = vsel %vm539, %v571, 0.0
    %v604 = vsel %vm540, %v572, 0.0
    %v605 = vsel %vm541, %v573, 0.0
    %v606 = vsel %vm542, %v574, 0.0
    %v607 = vsel %vm543, %v575, 0.0
    %v608 = vsel %vm544, %v576, 0.0
    %v609 = vsel %vm545, %v577, 0.0
    %v610 = vsel %vm546, %v578, 0.0
    %v611 = vsel %vm547, %v579, 0.0
    %v612 = vsel %vm548, %v580, 0.0
    %v613 = vsel %vm549, %v581, 0.0
    %v614 = vsel %vm550, %v582, 0.0
    %v615 = vsel %vm551, %v583, 0.0
    %v616 = vsel %vm552, %v584, 0.0
    %v617 = vsel %vm553, %v585, 0.0
    %v618 = vld [vmem:[#allocation7] sm:$0xff]
    %v619 = vld [vmem:[#allocation7 + $0x8] sm:$0xff]
    %v620 = vld [vmem:[#allocation7 + $0x10] sm:$0xff]
    %v621 = vld [vmem:[#allocation7 + $0x18] sm:$0xff]
    %v622 = vld [vmem:[#allocation7 + $0x20] sm:$0xff]
    %v623 = vld [vmem:[#allocation7 + $0x28] sm:$0xff]
    %v624 = vld [vmem:[#allocation7 + $0x30] sm:$0xff]
    %v625 = vld [vmem:[#allocation7 + $0x38] sm:$0xff]
    %v626 = vld [vmem:[#allocation7 + $0x40] sm:$0xff]
    %v627 = vld [vmem:[#allocation7 + $0x48] sm:$0xff]
    %v628 = vld [vmem:[#allocation7 + $0x50] sm:$0xff]
    %v629 = vld [vmem:[#allocation7 + $0x58] sm:$0xff]
    %v630 = vld [vmem:[#allocation7 + $0x60] sm:$0xff]
    %v631 = vld [vmem:[#allocation7 + $0x68] sm:$0xff]
    %v632 = vld [vmem:[#allocation7 + $0x70] sm:$0xff]
    %v633 = vld [vmem:[#allocation7 + $0x78] sm:$0xff]
    %v634 = vadd.f32 %v602, 0.0
    %v635 = vadd.f32 %v603, 0.0
    %v636 = vadd.f32 %v604, 0.0
    %v637 = vadd.f32 %v605, 0.0
    %v638 = vadd.f32 %v606, 0.0
    %v639 = vadd.f32 %v607, 0.0
    %v640 = vadd.f32 %v608, 0.0
    %v641 = vadd.f32 %v609, 0.0
    %v642 = vadd.f32 %v610, 0.0
    %v643 = vadd.f32 %v611, 0.0
    %v644 = vadd.f32 %v612, 0.0
    %v645 = vadd.f32 %v613, 0.0
    %v646 = vadd.f32 %v614, 0.0
    %v647 = vadd.f32 %v615, 0.0
    %v648 = vadd.f32 %v616, 0.0
    %v649 = vadd.f32 %v617, 0.0
    %v650 = vadd.f32 %v618, %v634
    %v651 = vadd.f32 %v619, %v635
    %v652 = vadd.f32 %v620, %v636
    %v653 = vadd.f32 %v621, %v637
    %v654 = vadd.f32 %v622, %v638
    %v655 = vadd.f32 %v623, %v639
    %v656 = vadd.f32 %v624, %v640
    %v657 = vadd.f32 %v625, %v641
    %v658 = vadd.f32 %v626, %v642
    %v659 = vadd.f32 %v627, %v643
    %v660 = vadd.f32 %v628, %v644
    %v661 = vadd.f32 %v629, %v645
    %v662 = vadd.f32 %v630, %v646
    %v663 = vadd.f32 %v631, %v647
    %v664 = vadd.f32 %v632, %v648
    %v665 = vadd.f32 %v633, %v649
    %666 = vst [vmem:[#allocation7] sm:$0xff] %v650
    %667 = vst [vmem:[#allocation7 + $0x8] sm:$0xff] %v651
    %668 = vst [vmem:[#allocation7 + $0x10] sm:$0xff] %v652
    %669 = vst [vmem:[#allocation7 + $0x18] sm:$0xff] %v653
    %670 = vst [vmem:[#allocation7 + $0x20] sm:$0xff] %v654
    %671 = vst [vmem:[#allocation7 + $0x28] sm:$0xff] %v655
    %672 = vst [vmem:[#allocation7 + $0x30] sm:$0xff] %v656
    %673 = vst [vmem:[#allocation7 + $0x38] sm:$0xff] %v657
    %674 = vst [vmem:[#allocation7 + $0x40] sm:$0xff] %v658
    %675 = vst [vmem:[#allocation7 + $0x48] sm:$0xff] %v659
    %676 = vst [vmem:[#allocation7 + $0x50] sm:$0xff] %v660
    %677 = vst [vmem:[#allocation7 + $0x58] sm:$0xff] %v661
    %678 = vst [vmem:[#allocation7 + $0x60] sm:$0xff] %v662
    %679 = vst [vmem:[#allocation7 + $0x68] sm:$0xff] %v663
    %680 = vst [vmem:[#allocation7 + $0x70] sm:$0xff] %v664
    %681 = vst [vmem:[#allocation7 + $0x78] sm:$0xff] %v665
    // Predicated region
    $region22: #{tpu_custom_call.1} parent=1 // pred_check
      _
    $region23: #{tpu_custom_call.1} parent=1 // pred_check_branch
      %683 = sbr.rel (0) target = $region25
    $region24: #{tpu_custom_call.1} parent=1 // pred_region
      %s685 = ssub.s32 2048, 2048
      %686 = vsyncadd [#allocation4], %s685
      %s688 = sshll.u32 [#allocation7], 4
      %s689 = int_to_ptr.vmem [resolvable:$true] %s688
      %691 = dma.vmem_to_hbm [thread:$0]  %s689, 2048, %s2, [#allocation4]
    $region25: #{tpu_custom_call.1} parent=1 // pred_fallthru
      _
    // Predicated region
    $region26: #{tpu_custom_call.1} parent=1 // pred_check
      _
    $region27: #{tpu_custom_call.1} parent=1 // pred_check_branch
      %693 = sbr.rel (0) target = $region29
    $region28: #{tpu_custom_call.1} parent=1 // pred_region
      %694 = dma.done [#allocation4], 2048
    $region29: #{tpu_custom_call.1} parent=1 // pred_fallthru
      _
    %695 = vsyncpa [#allocation3], 1
    %696 = vsyncpa [#allocation6], 1
    %697 = vsyncpa [#allocation4], 1

</llo_original>
